<compile_context>
chip_gen: v7x
topology: tpu7x:2x2x1
jax: 0.10.0
libtpu: 0.0.40
codegen_flags: <defaults>
</compile_context>

<pallas_src>
import functools

import jax
import jax.numpy as jnp
from jax.experimental import pallas as pl
from jax.experimental.pallas import tpu as pltpu


# ----------------------------------------------------------------------------
# Pallas kernel: fused AdaLIN for a block of B samples (rows)
# ----------------------------------------------------------------------------
def _adalin_kernel(x_ref, p_ref, o_ref, *, C: int, HW: int, eps: float):
    """x_ref/o_ref: (B, C*HW) — one sample per row, channels contiguous on lanes.
    p_ref: (B, 3*C) packed per-row params: [gamma | beta | rho]."""
    p = p_ref[...].astype(jnp.float32)                                   # (B, 3C) — tiny

    inv_hw = 1.0 / HW

    # ---- Pass 1: per-(sample, channel) instance-norm stats (lane reductions) ----
    means, ssqs = [], []
    for c in range(C):
        xc = x_ref[:, c * HW:(c + 1) * HW].astype(jnp.float32)           # (B, HW)
        m = jnp.sum(xc, axis=1, keepdims=True) * inv_hw                  # (B, 1)
        d = xc - m
        means.append(m)
        ssqs.append(jnp.sum(d * d, axis=1, keepdims=True))               # (B, 1)

    # ---- Layer-norm stats derived exactly from the IN sums (no extra x pass) ----
    ln_mean = sum(means) * (1.0 / C)                                     # (B, 1)
    ln_ssq = sum(ssqs[c] + HW * (means[c] - ln_mean) ** 2 for c in range(C))
    r_ln = jax.lax.rsqrt(ln_ssq * (1.0 / (C * HW - 1)) + eps)            # unbiased LN var

    # ---- Pass 2: fold rho-blend + affine into one scale/bias FMA per element ----
    #   out = gamma*[rho*(x-mu_in)*r_in + (1-rho)*(x-mu_ln)*r_ln] + beta
    #       = x * s_c + b_c
    for c in range(C):
        gamma_c = p[:, c:c + 1]
        beta_c = p[:, C + c:C + c + 1]
        rho_c = p[:, 2 * C + c:2 * C + c + 1]

        r_in = jax.lax.rsqrt(ssqs[c] * (1.0 / (HW - 1)) + eps)           # unbiased IN var
        a_in = rho_c * r_in
        a_ln = (1.0 - rho_c) * r_ln
        s_c = gamma_c * (a_in + a_ln)                                    # (B, 1)
        b_c = beta_c - gamma_c * (a_in * means[c] + a_ln * ln_mean)      # (B, 1)

        xc = x_ref[:, c * HW:(c + 1) * HW].astype(jnp.float32)
        o_ref[:, c * HW:(c + 1) * HW] = (xc * s_c + b_c).astype(o_ref.dtype)


# ----------------------------------------------------------------------------
# Wrapper: NCHW in/out, single fused pallas_call
# ----------------------------------------------------------------------------
def _pick_block_rows(n_rows: int, row_bytes: int, target_bytes: int = 1 << 20) -> int:
    """Rows per grid step: ~1 MiB of x per block, multiple of 8 rows (full f32
    sublane occupancy). Small batches fall back to the full dim (allowed by the
    (8,128) block-shape rule)."""
    b = max(1, target_bytes // max(1, row_bytes))
    b = min(b, n_rows)
    if b >= 8:
        return (b // 8) * 8
    return n_rows if n_rows <= 8 else 8


def adalin(x_nchw, gamma, beta, rho, eps: float = 1e-5, block_rows=None):
    N, C, H, W = x_nchw.shape
    HW = H * W
    row = C * HW

    # Free row-major reshape: one sample per row, each channel's H*W contiguous
    # on the 128-lane axis (channel boundaries lane-tile aligned when HW % 128 == 0;
    # other H,W still correct, just unaligned in-kernel slices).
    x2 = x_nchw.reshape(N, row)

    # Pack gamma / beta / rho into a single per-row parameter block: (N, 3C).
    params = jnp.concatenate(
        [
            gamma.reshape(N, C).astype(jnp.float32),
            beta.reshape(N, C).astype(jnp.float32),
            jnp.broadcast_to(rho.reshape(1, C).astype(jnp.float32), (N, C)),
        ],
        axis=1,
    )

    if block_rows is None:
        block_rows = _pick_block_rows(N, row * x2.dtype.itemsize)
    B = block_rows
    grid = (pl.cdiv(N, B),)

    kernel = functools.partial(_adalin_kernel, C=C, HW=HW, eps=eps)

    out = pl.pallas_call(
        kernel,
        out_shape=jax.ShapeDtypeStruct((N, row), x_nchw.dtype),
        grid=grid,
        in_specs=[
            pl.BlockSpec((B, row), lambda i: (i, 0)),        # x row block (~1 MiB)
            pl.BlockSpec((B, 3 * C), lambda i: (i, 0)),      # packed gamma/beta/rho
        ],
        out_specs=pl.BlockSpec((B, row), lambda i: (i, 0)),
        compiler_params=pltpu.CompilerParams(dimension_semantics=("parallel",)),
    )(x2, params)

    return out.reshape(N, C, H, W)


# ----------------------------------------------------------------------------
# Pure-JAX reference (matches torch semantics: unbiased variance)
# ----------------------------------------------------------------------------
def ref_adalin(x, gamma, beta, rho, eps=1e-5):
    in_mean = jnp.mean(x, axis=(2, 3), keepdims=True)
    in_var = jnp.var(x, axis=(2, 3), keepdims=True, ddof=1)
    out_in = (x - in_mean) / jnp.sqrt(in_var + eps)

    ln_mean = jnp.mean(x, axis=(1, 2, 3), keepdims=True)
    ln_var = jnp.var(x, axis=(1, 2, 3), keepdims=True, ddof=1)
    out_ln = (x - ln_mean) / jnp.sqrt(ln_var + eps)

    rho_b = rho.reshape(1, -1, 1, 1)
    out = rho_b * out_in + (1.0 - rho_b) * out_ln
    return out * gamma[:, :, None, None] + beta[:, :, None, None]


# ----------------------------------------------------------------------------
# Main
# ----------------------------------------------------------------------------
if __name__ == "__main__":
    N, C, H, W = 2, 4, 16, 16
    eps = 1e-5

    key = jax.random.PRNGKey(0)
    k_x, k_g, k_b = jax.random.split(key, 3)

    x = jax.random.normal(k_x, (N, C, H, W), dtype=jnp.float32)      # NCHW, like PyTorch
    gamma = jax.random.normal(k_g, (N, C), dtype=jnp.float32)
    beta = jax.random.normal(k_b, (N, C), dtype=jnp.float32)
    rho = jnp.full((1, C, 1, 1), 0.9, dtype=jnp.float32)             # Parameter init: fill_(0.9)

    out = jax.block_until_ready(adalin(x, gamma, beta, rho, eps=eps))

    ref = jax.block_until_ready(ref_adalin(x, gamma, beta, rho, eps=eps))
    assert out.shape == (N, C, H, W), out.shape
    assert jnp.allclose(out, ref, atol=1e-4, rtol=1e-4), float(jnp.max(jnp.abs(out - ref)))

    print("KERNEL_OK")
</pallas_src>

<mosaic_0001>
module attributes {stable_mosaic.version = 11 : i64} {
  func.func @_adalin_kernel(%arg0: i32, %arg1: memref<2x1024xf32, #tpu.memory_space<vmem>>, %arg2: memref<2x12xf32, #tpu.memory_space<vmem>>, %arg3: memref<2x1024xf32, #tpu.memory_space<vmem>>) attributes {dimension_semantics = [#tpu.dimension_semantics<parallel>], iteration_bounds = array<i64: 1>, scalar_prefetch = 0 : i64, scratch_operands = 0 : i64, tpu.core_type = #tpu.core_type<tc>, window_params = [{transform_indices = @transform_0, window_bounds = array<i64: 2, 1024>}, {transform_indices = @transform_1, window_bounds = array<i64: 2, 12>}, {transform_indices = @transform_2, window_bounds = array<i64: 2, 1024>}]} {
    %c0 = arith.constant 0 : index
    %c0_0 = arith.constant 0 : index
    %0 = vector.load %arg2[%c0, %c0_0] : memref<2x12xf32, #tpu.memory_space<vmem>>, vector<2x12xf32>
    %c0_1 = arith.constant 0 : index
    %c0_2 = arith.constant 0 : index
    %1 = vector.load %arg1[%c0_1, %c0_2] : memref<2x1024xf32, #tpu.memory_space<vmem>>, vector<2x256xf32>
    %cst = arith.constant dense<0.000000e+00> : vector<2xf32>
    %2 = vector.multi_reduction <add>, %1, %cst [1] : vector<2x256xf32> to vector<2xf32>
    %3 = vector.shape_cast %2 : vector<2xf32> to vector<2x1xf32>
    %cst_3 = arith.constant 3.906250e-03 : f32
    %4 = vector.broadcast %cst_3 : f32 to vector<2x1xf32>
    %5 = arith.mulf %3, %4 : vector<2x1xf32>
    %6 = vector.broadcast %5 : vector<2x1xf32> to vector<2x256xf32>
    %7 = arith.subf %1, %6 : vector<2x256xf32>
    %8 = arith.mulf %7, %7 : vector<2x256xf32>
    %cst_4 = arith.constant dense<0.000000e+00> : vector<2xf32>
    %9 = vector.multi_reduction <add>, %8, %cst_4 [1] : vector<2x256xf32> to vector<2xf32>
    %10 = vector.shape_cast %9 : vector<2xf32> to vector<2x1xf32>
    %c0_5 = arith.constant 0 : index
    %c256 = arith.constant 256 : index
    %11 = vector.load %arg1[%c0_5, %c256] : memref<2x1024xf32, #tpu.memory_space<vmem>>, vector<2x256xf32>
    %cst_6 = arith.constant dense<0.000000e+00> : vector<2xf32>
    %12 = vector.multi_reduction <add>, %11, %cst_6 [1] : vector<2x256xf32> to vector<2xf32>
    %13 = vector.shape_cast %12 : vector<2xf32> to vector<2x1xf32>
    %cst_7 = arith.constant 3.906250e-03 : f32
    %14 = vector.broadcast %cst_7 : f32 to vector<2x1xf32>
    %15 = arith.mulf %13, %14 : vector<2x1xf32>
    %16 = vector.broadcast %15 : vector<2x1xf32> to vector<2x256xf32>
    %17 = arith.subf %11, %16 : vector<2x256xf32>
    %18 = arith.mulf %17, %17 : vector<2x256xf32>
    %cst_8 = arith.constant dense<0.000000e+00> : vector<2xf32>
    %19 = vector.multi_reduction <add>, %18, %cst_8 [1] : vector<2x256xf32> to vector<2xf32>
    %20 = vector.shape_cast %19 : vector<2xf32> to vector<2x1xf32>
    %c0_9 = arith.constant 0 : index
    %c512 = arith.constant 512 : index
    %21 = vector.load %arg1[%c0_9, %c512] : memref<2x1024xf32, #tpu.memory_space<vmem>>, vector<2x256xf32>
    %cst_10 = arith.constant dense<0.000000e+00> : vector<2xf32>
    %22 = vector.multi_reduction <add>, %21, %cst_10 [1] : vector<2x256xf32> to vector<2xf32>
    %23 = vector.shape_cast %22 : vector<2xf32> to vector<2x1xf32>
    %cst_11 = arith.constant 3.906250e-03 : f32
    %24 = vector.broadcast %cst_11 : f32 to vector<2x1xf32>
    %25 = arith.mulf %23, %24 : vector<2x1xf32>
    %26 = vector.broadcast %25 : vector<2x1xf32> to vector<2x256xf32>
    %27 = arith.subf %21, %26 : vector<2x256xf32>
    %28 = arith.mulf %27, %27 : vector<2x256xf32>
    %cst_12 = arith.constant dense<0.000000e+00> : vector<2xf32>
    %29 = vector.multi_reduction <add>, %28, %cst_12 [1] : vector<2x256xf32> to vector<2xf32>
    %30 = vector.shape_cast %29 : vector<2xf32> to vector<2x1xf32>
    %c0_13 = arith.constant 0 : index
    %c768 = arith.constant 768 : index
    %31 = vector.load %arg1[%c0_13, %c768] : memref<2x1024xf32, #tpu.memory_space<vmem>>, vector<2x256xf32>
    %cst_14 = arith.constant dense<0.000000e+00> : vector<2xf32>
    %32 = vector.multi_reduction <add>, %31, %cst_14 [1] : vector<2x256xf32> to vector<2xf32>
    %33 = vector.shape_cast %32 : vector<2xf32> to vector<2x1xf32>
    %cst_15 = arith.constant 3.906250e-03 : f32
    %34 = vector.broadcast %cst_15 : f32 to vector<2x1xf32>
    %35 = arith.mulf %33, %34 : vector<2x1xf32>
    %36 = vector.broadcast %35 : vector<2x1xf32> to vector<2x256xf32>
    %37 = arith.subf %31, %36 : vector<2x256xf32>
    %38 = arith.mulf %37, %37 : vector<2x256xf32>
    %cst_16 = arith.constant dense<0.000000e+00> : vector<2xf32>
    %39 = vector.multi_reduction <add>, %38, %cst_16 [1] : vector<2x256xf32> to vector<2xf32>
    %40 = vector.shape_cast %39 : vector<2xf32> to vector<2x1xf32>
    %cst_17 = arith.constant 0.000000e+00 : f32
    %41 = vector.broadcast %cst_17 : f32 to vector<2x1xf32>
    %42 = arith.addf %41, %5 : vector<2x1xf32>
    %43 = arith.addf %42, %15 : vector<2x1xf32>
    %44 = arith.addf %43, %25 : vector<2x1xf32>
    %45 = arith.addf %44, %35 : vector<2x1xf32>
    %cst_18 = arith.constant 2.500000e-01 : f32
    %46 = vector.broadcast %cst_18 : f32 to vector<2x1xf32>
    %47 = arith.mulf %45, %46 : vector<2x1xf32>
    %48 = arith.subf %5, %47 : vector<2x1xf32>
    %49 = arith.mulf %48, %48 : vector<2x1xf32>
    %cst_19 = arith.constant 2.560000e+02 : f32
    %50 = vector.broadcast %cst_19 : f32 to vector<2x1xf32>
    %51 = arith.mulf %50, %49 : vector<2x1xf32>
    %52 = arith.addf %10, %51 : vector<2x1xf32>
    %cst_20 = arith.constant 0.000000e+00 : f32
    %53 = vector.broadcast %cst_20 : f32 to vector<2x1xf32>
    %54 = arith.addf %53, %52 : vector<2x1xf32>
    %55 = arith.subf %15, %47 : vector<2x1xf32>
    %56 = arith.mulf %55, %55 : vector<2x1xf32>
    %cst_21 = arith.constant 2.560000e+02 : f32
    %57 = vector.broadcast %cst_21 : f32 to vector<2x1xf32>
    %58 = arith.mulf %57, %56 : vector<2x1xf32>
    %59 = arith.addf %20, %58 : vector<2x1xf32>
    %60 = arith.addf %54, %59 : vector<2x1xf32>
    %61 = arith.subf %25, %47 : vector<2x1xf32>
    %62 = arith.mulf %61, %61 : vector<2x1xf32>
    %cst_22 = arith.constant 2.560000e+02 : f32
    %63 = vector.broadcast %cst_22 : f32 to vector<2x1xf32>
    %64 = arith.mulf %63, %62 : vector<2x1xf32>
    %65 = arith.addf %30, %64 : vector<2x1xf32>
    %66 = arith.addf %60, %65 : vector<2x1xf32>
    %67 = arith.subf %35, %47 : vector<2x1xf32>
    %68 = arith.mulf %67, %67 : vector<2x1xf32>
    %cst_23 = arith.constant 2.560000e+02 : f32
    %69 = vector.broadcast %cst_23 : f32 to vector<2x1xf32>
    %70 = arith.mulf %69, %68 : vector<2x1xf32>
    %71 = arith.addf %40, %70 : vector<2x1xf32>
    %72 = arith.addf %66, %71 : vector<2x1xf32>
    %cst_24 = arith.constant 9.77517105E-4 : f32
    %73 = vector.broadcast %cst_24 : f32 to vector<2x1xf32>
    %74 = arith.mulf %72, %73 : vector<2x1xf32>
    %cst_25 = arith.constant 9.99999974E-6 : f32
    %75 = vector.broadcast %cst_25 : f32 to vector<2x1xf32>
    %76 = arith.addf %74, %75 : vector<2x1xf32>
    %77 = math.rsqrt %76 : vector<2x1xf32>
    %78 = vector.extract_strided_slice %0 {offsets = [0, 0], sizes = [2, 1], strides = [1, 1]} : vector<2x12xf32> to vector<2x1xf32>
    %79 = vector.extract_strided_slice %0 {offsets = [0, 4], sizes = [2, 1], strides = [1, 1]} : vector<2x12xf32> to vector<2x1xf32>
    %80 = vector.extract_strided_slice %0 {offsets = [0, 8], sizes = [2, 1], strides = [1, 1]} : vector<2x12xf32> to vector<2x1xf32>
    %cst_26 = arith.constant 0.00392156886 : f32
    %81 = vector.broadcast %cst_26 : f32 to vector<2x1xf32>
    %82 = arith.mulf %10, %81 : vector<2x1xf32>
    %cst_27 = arith.constant 9.99999974E-6 : f32
    %83 = vector.broadcast %cst_27 : f32 to vector<2x1xf32>
    %84 = arith.addf %82, %83 : vector<2x1xf32>
    %85 = math.rsqrt %84 : vector<2x1xf32>
    %86 = arith.mulf %80, %85 : vector<2x1xf32>
    %cst_28 = arith.constant 1.000000e+00 : f32
    %87 = vector.broadcast %cst_28 : f32 to vector<2x1xf32>
    %88 = arith.subf %87, %80 : vector<2x1xf32>
    %89 = arith.mulf %88, %77 : vector<2x1xf32>
    %90 = arith.addf %86, %89 : vector<2x1xf32>
    %91 = arith.mulf %78, %90 : vector<2x1xf32>
    %92 = arith.mulf %86, %5 : vector<2x1xf32>
    %93 = arith.mulf %89, %47 : vector<2x1xf32>
    %94 = arith.addf %92, %93 : vector<2x1xf32>
    %95 = arith.mulf %78, %94 : vector<2x1xf32>
    %96 = arith.subf %79, %95 : vector<2x1xf32>
    %c0_29 = arith.constant 0 : index
    %c0_30 = arith.constant 0 : index
    %97 = vector.load %arg1[%c0_29, %c0_30] : memref<2x1024xf32, #tpu.memory_space<vmem>>, vector<2x256xf32>
    %98 = vector.broadcast %91 : vector<2x1xf32> to vector<2x256xf32>
    %99 = arith.mulf %97, %98 : vector<2x256xf32>
    %100 = vector.broadcast %96 : vector<2x1xf32> to vector<2x256xf32>
    %101 = arith.addf %99, %100 : vector<2x256xf32>
    %c0_31 = arith.constant 0 : index
    %c0_32 = arith.constant 0 : index
    %102 = vector.load %arg3[%c0_31, %c0_32] : memref<2x1024xf32, #tpu.memory_space<vmem>>, vector<2x256xf32>
    tpu.vector_store %arg3[%c0_31, %c0_32], %101 {strides = array<i32>} : memref<2x1024xf32, #tpu.memory_space<vmem>>, vector<2x256xf32>,
    %103 = vector.extract_strided_slice %0 {offsets = [0, 1], sizes = [2, 1], strides = [1, 1]} : vector<2x12xf32> to vector<2x1xf32>
    %104 = vector.extract_strided_slice %0 {offsets = [0, 5], sizes = [2, 1], strides = [1, 1]} : vector<2x12xf32> to vector<2x1xf32>
    %105 = vector.extract_strided_slice %0 {offsets = [0, 9], sizes = [2, 1], strides = [1, 1]} : vector<2x12xf32> to vector<2x1xf32>
    %cst_33 = arith.constant 0.00392156886 : f32
    %106 = vector.broadcast %cst_33 : f32 to vector<2x1xf32>
    %107 = arith.mulf %20, %106 : vector<2x1xf32>
    %cst_34 = arith.constant 9.99999974E-6 : f32
    %108 = vector.broadcast %cst_34 : f32 to vector<2x1xf32>
    %109 = arith.addf %107, %108 : vector<2x1xf32>
    %110 = math.rsqrt %109 : vector<2x1xf32>
    %111 = arith.mulf %105, %110 : vector<2x1xf32>
    %cst_35 = arith.constant 1.000000e+00 : f32
    %112 = vector.broadcast %cst_35 : f32 to vector<2x1xf32>
    %113 = arith.subf %112, %105 : vector<2x1xf32>
    %114 = arith.mulf %113, %77 : vector<2x1xf32>
    %115 = arith.addf %111, %114 : vector<2x1xf32>
    %116 = arith.mulf %103, %115 : vector<2x1xf32>
    %117 = arith.mulf %111, %15 : vector<2x1xf32>
    %118 = arith.mulf %114, %47 : vector<2x1xf32>
    %119 = arith.addf %117, %118 : vector<2x1xf32>
    %120 = arith.mulf %103, %119 : vector<2x1xf32>
    %121 = arith.subf %104, %120 : vector<2x1xf32>
    %c0_36 = arith.constant 0 : index
    %c256_37 = arith.constant 256 : index
    %122 = vector.load %arg1[%c0_36, %c256_37] : memref<2x1024xf32, #tpu.memory_space<vmem>>, vector<2x256xf32>
    %123 = vector.broadcast %116 : vector<2x1xf32> to vector<2x256xf32>
    %124 = arith.mulf %122, %123 : vector<2x256xf32>
    %125 = vector.broadcast %121 : vector<2x1xf32> to vector<2x256xf32>
    %126 = arith.addf %124, %125 : vector<2x256xf32>
    %c0_38 = arith.constant 0 : index
    %c256_39 = arith.constant 256 : index
    %127 = vector.load %arg3[%c0_38, %c256_39] : memref<2x1024xf32, #tpu.memory_space<vmem>>, vector<2x256xf32>
    tpu.vector_store %arg3[%c0_38, %c256_39], %126 {strides = array<i32>} : memref<2x1024xf32, #tpu.memory_space<vmem>>, vector<2x256xf32>,
    %128 = vector.extract_strided_slice %0 {offsets = [0, 2], sizes = [2, 1], strides = [1, 1]} : vector<2x12xf32> to vector<2x1xf32>
    %129 = vector.extract_strided_slice %0 {offsets = [0, 6], sizes = [2, 1], strides = [1, 1]} : vector<2x12xf32> to vector<2x1xf32>
    %130 = vector.extract_strided_slice %0 {offsets = [0, 10], sizes = [2, 1], strides = [1, 1]} : vector<2x12xf32> to vector<2x1xf32>
    %cst_40 = arith.constant 0.00392156886 : f32
    %131 = vector.broadcast %cst_40 : f32 to vector<2x1xf32>
    %132 = arith.mulf %30, %131 : vector<2x1xf32>
    %cst_41 = arith.constant 9.99999974E-6 : f32
    %133 = vector.broadcast %cst_41 : f32 to vector<2x1xf32>
    %134 = arith.addf %132, %133 : vector<2x1xf32>
    %135 = math.rsqrt %134 : vector<2x1xf32>
    %136 = arith.mulf %130, %135 : vector<2x1xf32>
    %cst_42 = arith.constant 1.000000e+00 : f32
    %137 = vector.broadcast %cst_42 : f32 to vector<2x1xf32>
    %138 = arith.subf %137, %130 : vector<2x1xf32>
    %139 = arith.mulf %138, %77 : vector<2x1xf32>
    %140 = arith.addf %136, %139 : vector<2x1xf32>
    %141 = arith.mulf %128, %140 : vector<2x1xf32>
    %142 = arith.mulf %136, %25 : vector<2x1xf32>
    %143 = arith.mulf %139, %47 : vector<2x1xf32>
    %144 = arith.addf %142, %143 : vector<2x1xf32>
    %145 = arith.mulf %128, %144 : vector<2x1xf32>
    %146 = arith.subf %129, %145 : vector<2x1xf32>
    %c0_43 = arith.constant 0 : index
    %c512_44 = arith.constant 512 : index
    %147 = vector.load %arg1[%c0_43, %c512_44] : memref<2x1024xf32, #tpu.memory_space<vmem>>, vector<2x256xf32>
    %148 = vector.broadcast %141 : vector<2x1xf32> to vector<2x256xf32>
    %149 = arith.mulf %147, %148 : vector<2x256xf32>
    %150 = vector.broadcast %146 : vector<2x1xf32> to vector<2x256xf32>
    %151 = arith.addf %149, %150 : vector<2x256xf32>
    %c0_45 = arith.constant 0 : index
    %c512_46 = arith.constant 512 : index
    %152 = vector.load %arg3[%c0_45, %c512_46] : memref<2x1024xf32, #tpu.memory_space<vmem>>, vector<2x256xf32>
    tpu.vector_store %arg3[%c0_45, %c512_46], %151 {strides = array<i32>} : memref<2x1024xf32, #tpu.memory_space<vmem>>, vector<2x256xf32>,
    %153 = vector.extract_strided_slice %0 {offsets = [0, 3], sizes = [2, 1], strides = [1, 1]} : vector<2x12xf32> to vector<2x1xf32>
    %154 = vector.extract_strided_slice %0 {offsets = [0, 7], sizes = [2, 1], strides = [1, 1]} : vector<2x12xf32> to vector<2x1xf32>
    %155 = vector.extract_strided_slice %0 {offsets = [0, 11], sizes = [2, 1], strides = [1, 1]} : vector<2x12xf32> to vector<2x1xf32>
    %cst_47 = arith.constant 0.00392156886 : f32
    %156 = vector.broadcast %cst_47 : f32 to vector<2x1xf32>
    %157 = arith.mulf %40, %156 : vector<2x1xf32>
    %cst_48 = arith.constant 9.99999974E-6 : f32
    %158 = vector.broadcast %cst_48 : f32 to vector<2x1xf32>
    %159 = arith.addf %157, %158 : vector<2x1xf32>
    %160 = math.rsqrt %159 : vector<2x1xf32>
    %161 = arith.mulf %155, %160 : vector<2x1xf32>
    %cst_49 = arith.constant 1.000000e+00 : f32
    %162 = vector.broadcast %cst_49 : f32 to vector<2x1xf32>
    %163 = arith.subf %162, %155 : vector<2x1xf32>
    %164 = arith.mulf %163, %77 : vector<2x1xf32>
    %165 = arith.addf %161, %164 : vector<2x1xf32>
    %166 = arith.mulf %153, %165 : vector<2x1xf32>
    %167 = arith.mulf %161, %35 : vector<2x1xf32>
    %168 = arith.mulf %164, %47 : vector<2x1xf32>
    %169 = arith.addf %167, %168 : vector<2x1xf32>
    %170 = arith.mulf %153, %169 : vector<2x1xf32>
    %171 = arith.subf %154, %170 : vector<2x1xf32>
    %c0_50 = arith.constant 0 : index
    %c768_51 = arith.constant 768 : index
    %172 = vector.load %arg1[%c0_50, %c768_51] : memref<2x1024xf32, #tpu.memory_space<vmem>>, vector<2x256xf32>
    %173 = vector.broadcast %166 : vector<2x1xf32> to vector<2x256xf32>
    %174 = arith.mulf %172, %173 : vector<2x256xf32>
    %175 = vector.broadcast %171 : vector<2x1xf32> to vector<2x256xf32>
    %176 = arith.addf %174, %175 : vector<2x256xf32>
    %c0_52 = arith.constant 0 : index
    %c768_53 = arith.constant 768 : index
    %177 = vector.load %arg3[%c0_52, %c768_53] : memref<2x1024xf32, #tpu.memory_space<vmem>>, vector<2x256xf32>
    tpu.vector_store %arg3[%c0_52, %c768_53], %176 {strides = array<i32>} : memref<2x1024xf32, #tpu.memory_space<vmem>>, vector<2x256xf32>,
    return
  }
  func.func @transform_0(%arg0: i32) -> (i32, i32) {
    %c0_i32 = arith.constant 0 : i32
    %c0_i32_0 = arith.constant 0 : i32
    return %arg0, %c0_i32 : i32, i32
  }
  func.func @transform_1(%arg0: i32) -> (i32, i32) {
    %c0_i32 = arith.constant 0 : i32
    %c0_i32_0 = arith.constant 0 : i32
    return %arg0, %c0_i32 : i32, i32
  }
  func.func @transform_2(%arg0: i32) -> (i32, i32) {
    %c0_i32 = arith.constant 0 : i32
    %c0_i32_0 = arith.constant 0 : i32
    return %arg0, %c0_i32 : i32, i32
  }
}

</mosaic_0001>

<llo_original>
// kernel: tpu_custom_call.1
$region0: #{tpu_custom_call.1}
  #allocation0 [shape = 'u32[]', space=smem, size = 0x4, offset = 0x4, fixed_abs, tag = 'smem constant byte address 0x4 - core index']
  #allocation1 [shape = 'u32[144,128]{1,0:T(1,128)}', space=vmem, size = 0x12000, scoped, tag = 'internal scratch']
  %s0 = inlined_call_operand.hbm [shape: f32[2,1024], index: 0, kind: input, shape index: {}]
  %s1 = inlined_call_operand.vmem [shape: f32[2,12], index: 1, kind: input, shape index: {}]
  %s2 = inlined_call_operand.hbm [shape: f32[2,1024], index: 2, kind: output, shape index: {}]
  %s3 = sld [smem:[#allocation0]]
  $region22: #{tpu_custom_call.1} parent=0
    _
  %s5 = ssub.s32 1, %s3
  %s6 = scalar_select 0, %s5, %s3
  $region1: #{tpu_custom_call.1} parent=0
    #allocation2 [shape = 'u8[8192]{0}', space=vmem, size = 0x2000, scoped, tag = 'input window, operand 0, single buffered']
    #allocation3 [shape = 's32[1]{0}', space=sflag, size = 0x4, scoped, tag = 'scoped memory for tpu_custom_call.1']
    #allocation4 [shape = 's32[1]{0}', space=sflag, size = 0x4, scoped, tag = 'scoped memory for tpu_custom_call.1']
    #allocation5 [shape = 'u8[8192]{0}', space=vmem, size = 0x2000, scoped, tag = 'output window, operand 0, single buffered']
    %7 = vsyncpa [#allocation3], 0
    %8 = vsyncpa [#allocation4], 0
    // Predicated region
    $region2: #{tpu_custom_call.1} parent=1 // pred_check
      _
    $region3: #{tpu_custom_call.1} parent=1 // pred_check_branch
      %10 = sbr.rel (0) target = $region5
    $region4: #{tpu_custom_call.1} parent=1 // pred_region
      %s12 = ssub.s32 256, 256
      %13 = vsyncadd [#allocation3], %s12
      %s15 = sshll.u32 [#allocation2], 4
      %s16 = int_to_ptr.vmem [resolvable:$true] %s15
      %18 = dma.hbm_to_vmem [thread:$0]  %s0, 256, %s16, [#allocation3]
    $region5: #{tpu_custom_call.1} parent=1 // pred_fallthru
      _
    // Predicated region
    $region6: #{tpu_custom_call.1} parent=1 // pred_check
      _
    $region7: #{tpu_custom_call.1} parent=1 // pred_check_branch
      %20 = sbr.rel (0) target = $region9
    $region8: #{tpu_custom_call.1} parent=1 // pred_region
      _
    $region9: #{tpu_custom_call.1} parent=1 // pred_fallthru
      _
    // Predicated region
    $region10: #{tpu_custom_call.1} parent=1 // pred_check
      _
    $region11: #{tpu_custom_call.1} parent=1 // pred_check_branch
      %22 = sbr.rel (0) target = $region13
    $region12: #{tpu_custom_call.1} parent=1 // pred_region
      %23 = dma.done [#allocation3], 256
    $region13: #{tpu_custom_call.1} parent=1 // pred_fallthru
      _
    %v24 = vld [vmem:[%s1] sm:$0x3]
    %v25 = vld [vmem:[#allocation2] sm:$0xf]
    %v28 = vunpack.c.l.s4 1983009808
    %v29 = vunpack.c.0.s8 %v28
    %v30 = vlaneseq
    %v31 = vshrl.u32 %v30, 7
    %v32 = vsub.s32 %v29, %v31
    %v33 = vrot.slane %v25, %v32
    %v34 = vcombine.high %v33, %v33
    %vm37 = vcmask 1041408
    %v38 = vsel %vm37, %v33, 0.0
    %v39 = vsel %vm37, %v34, 0.0
    %v40 = vadd.f32 %v38, %v39
    %41 = vadd.xlane.f32.xlu0 %v40
    %v42 = vpop.xlane.xlu0 %41
    %v43 = vmul.f32 %v42, 0.00390625
    %v46 = vunpack.c.l.s4 269488144
    %v47 = vunpack.c.0.s8 %v46
    %v48 = vlaneseq
    %v49 = vshrl.u32 %v48, 7
    %v50 = vsub.s32 %v47, %v49
    %v51 = vrot.slane %v43, %v50
    %v53 = vsub.f32 %v25, %v51
    %v54 = vmul.f32 %v53, %v53
    %v57 = vunpack.c.l.s4 1983009808
    %v58 = vunpack.c.0.s8 %v57
    %v59 = vlaneseq
    %v60 = vshrl.u32 %v59, 7
    %v61 = vsub.s32 %v58, %v60
    %v62 = vrot.slane %v54, %v61
    %v63 = vcombine.high %v62, %v62
    %v66 = vsel %vm37, %v62, 0.0
    %v67 = vsel %vm37, %v63, 0.0
    %v68 = vadd.f32 %v66, %v67
    %69 = vadd.xlane.f32.xlu0 %v68
    %v70 = vpop.xlane.xlu0 %69
    %v71 = vld [vmem:[#allocation2 + $0x4] sm:$0xf]
    %v74 = vunpack.c.l.s4 1983009808
    %v75 = vunpack.c.0.s8 %v74
    %v76 = vlaneseq
    %v77 = vshrl.u32 %v76, 7
    %v78 = vsub.s32 %v75, %v77
    %v79 = vrot.slane %v71, %v78
    %v80 = vcombine.high %v79, %v79
    %v83 = vsel %vm37, %v79, 0.0
    %v84 = vsel %vm37, %v80, 0.0
    %v85 = vadd.f32 %v83, %v84
    %86 = vadd.xlane.f32.xlu0 %v85
    %v87 = vpop.xlane.xlu0 %86
    %v88 = vmul.f32 %v87, 0.00390625
    %v91 = vunpack.c.l.s4 269488144
    %v92 = vunpack.c.0.s8 %v91
    %v93 = vlaneseq
    %v94 = vshrl.u32 %v93, 7
    %v95 = vsub.s32 %v92, %v94
    %v96 = vrot.slane %v88, %v95
    %v98 = vsub.f32 %v71, %v96
    %v99 = vmul.f32 %v98, %v98
    %v102 = vunpack.c.l.s4 1983009808
    %v103 = vunpack.c.0.s8 %v102
    %v104 = vlaneseq
    %v105 = vshrl.u32 %v104, 7
    %v106 = vsub.s32 %v103, %v105
    %v107 = vrot.slane %v99, %v106
    %v108 = vcombine.high %v107, %v107
    %v111 = vsel %vm37, %v107, 0.0
    %v112 = vsel %vm37, %v108, 0.0
    %v113 = vadd.f32 %v111, %v112
    %114 = vadd.xlane.f32.xlu0 %v113
    %v115 = vpop.xlane.xlu0 %114
    %v116 = vld [vmem:[#allocation2 + $0x8] sm:$0xf]
    %v119 = vunpack.c.l.s4 1983009808
    %v120 = vunpack.c.0.s8 %v119
    %v121 = vlaneseq
    %v122 = vshrl.u32 %v121, 7
    %v123 = vsub.s32 %v120, %v122
    %v124 = vrot.slane %v116, %v123
    %v125 = vcombine.high %v124, %v124
    %v128 = vsel %vm37, %v124, 0.0
    %v129 = vsel %vm37, %v125, 0.0
    %v130 = vadd.f32 %v128, %v129
    %131 = vadd.xlane.f32.xlu0 %v130
    %v132 = vpop.xlane.xlu0 %131
    %v133 = vmul.f32 %v132, 0.00390625
    %v136 = vunpack.c.l.s4 269488144
    %v137 = vunpack.c.0.s8 %v136
    %v138 = vlaneseq
    %v139 = vshrl.u32 %v138, 7
    %v140 = vsub.s32 %v137, %v139
    %v141 = vrot.slane %v133, %v140
    %v143 = vsub.f32 %v116, %v141
    %v144 = vmul.f32 %v143, %v143
    %v147 = vunpack.c.l.s4 1983009808
    %v148 = vunpack.c.0.s8 %v147
    %v149 = vlaneseq
    %v150 = vshrl.u32 %v149, 7
    %v151 = vsub.s32 %v148, %v150
    %v152 = vrot.slane %v144, %v151
    %v153 = vcombine.high %v152, %v152
    %v156 = vsel %vm37, %v152, 0.0
    %v157 = vsel %vm37, %v153, 0.0
    %v158 = vadd.f32 %v156, %v157
    %159 = vadd.xlane.f32.xlu0 %v158
    %v160 = vpop.xlane.xlu0 %159
    %v161 = vld [vmem:[#allocation2 + $0xc] sm:$0xf]
    %v164 = vunpack.c.l.s4 1983009808
    %v165 = vunpack.c.0.s8 %v164
    %v166 = vlaneseq
    %v167 = vshrl.u32 %v166, 7
    %v168 = vsub.s32 %v165, %v167
    %v169 = vrot.slane %v161, %v168
    %v170 = vcombine.high %v169, %v169
    %v173 = vsel %vm37, %v169, 0.0
    %v174 = vsel %vm37, %v170, 0.0
    %v175 = vadd.f32 %v173, %v174
    %176 = vadd.xlane.f32.xlu0 %v175
    %v177 = vpop.xlane.xlu0 %176
    %v178 = vmul.f32 %v177, 0.00390625
    %v181 = vunpack.c.l.s4 269488144
    %v182 = vunpack.c.0.s8 %v181
    %v183 = vlaneseq
    %v184 = vshrl.u32 %v183, 7
    %v185 = vsub.s32 %v182, %v184
    %v186 = vrot.slane %v178, %v185
    %v188 = vsub.f32 %v161, %v186
    %v189 = vmul.f32 %v188, %v188
    %v192 = vunpack.c.l.s4 1983009808
    %v193 = vunpack.c.0.s8 %v192
    %v194 = vlaneseq
    %v195 = vshrl.u32 %v194, 7
    %v196 = vsub.s32 %v193, %v195
    %v197 = vrot.slane %v189, %v196
    %v198 = vcombine.high %v197, %v197
    %v201 = vsel %vm37, %v197, 0.0
    %v202 = vsel %vm37, %v198, 0.0
    %v203 = vadd.f32 %v201, %v202
    %204 = vadd.xlane.f32.xlu0 %v203
    %v205 = vpop.xlane.xlu0 %204
    %v206 = vadd.f32 %v43, 0.0
    %v207 = vadd.f32 %v206, %v88
    %v208 = vadd.f32 %v207, %v133
    %v209 = vadd.f32 %v208, %v178
    %v210 = vmul.f32 %v209, 0.25
    %v211 = vsub.f32 %v43, %v210
    %v212 = vmul.f32 %v211, %v211
    %v213 = vmul.f32 %v212, 256.0
    %v214 = vadd.f32 %v70, %v213
    %v215 = vadd.f32 %v214, 0.0
    %v216 = vsub.f32 %v88, %v210
    %v217 = vmul.f32 %v216, %v216
    %v218 = vmul.f32 %v217, 256.0
    %v219 = vadd.f32 %v115, %v218
    %v220 = vadd.f32 %v215, %v219
    %v221 = vsub.f32 %v133, %v210
    %v222 = vmul.f32 %v221, %v221
    %v223 = vmul.f32 %v222, 256.0
    %v224 = vadd.f32 %v160, %v223
    %v225 = vadd.f32 %v220, %v224
    %v226 = vsub.f32 %v178, %v210
    %v227 = vmul.f32 %v226, %v226
    %v228 = vmul.f32 %v227, 256.0
    %v229 = vadd.f32 %v205, %v228
    %v230 = vadd.f32 %v225, %v229
    %v231 = vmul.f32 %v230, 0.0009775171
    %v232 = vadd.f32 %v231, 1e-05
    %v233 = vrsqrt.pop %v232
    %v234 = vmul.f32 %v70, 0.003921569
    %v235 = vadd.f32 %v234, 1e-05
    %v236 = vrsqrt.pop %v235
    %v237 = vmul.f32 %v24, %v236
    %v238 = vsub.f32 1.0, %v24
    %v239 = vmul.f32 %v238, %v233
    %v240 = vadd.f32 %v237, %v239
    %242 = vrot.lane.b32.xlu0 %v240, 120
    %v243 = vpop.permute.xlu0 %242
    %v245 = vmul.f32 %v24, %v243
    %v246 = vmul.f32 %v237, %v43
    %v247 = vmul.f32 %v239, %v210
    %v248 = vadd.f32 %v246, %v247
    %250 = vrot.lane.b32.xlu0 %v248, 120
    %v251 = vpop.permute.xlu0 %250
    %v253 = vmul.f32 %v24, %v251
    %255 = vrot.lane.b32.xlu0 %v253, 4
    %v256 = vpop.permute.xlu0 %255
    %v258 = vsub.f32 %v24, %v256
    %260 = vset.pattern.permute.xlu0 0
    %261 = vperm.xlu0 %260, %v245
    %v262 = vpop.permute.xlu0 %261
    %v264 = vunpack.c.l.s4 269488144
    %v265 = vunpack.c.0.s8 %v264
    %v266 = vlaneseq
    %v267 = vshrl.u32 %v266, 7
    %v268 = vsub.s32 %v265, %v267
    %v269 = vrot.slane %v262, %v268
    %v271 = vmul.f32 %v25, %v269
    %273 = vset.pattern.permute.xlu0 4
    %274 = vperm.xlu0 %273, %v258
    %v275 = vpop.permute.xlu0 %274
    %v277 = vunpack.c.l.s4 269488144
    %v278 = vunpack.c.0.s8 %v277
    %v279 = vlaneseq
    %v280 = vshrl.u32 %v279, 7
    %v281 = vsub.s32 %v278, %v280
    %v282 = vrot.slane %v275, %v281
    %v284 = vadd.f32 %v271, %v282
    %285 = vst [vmem:[#allocation5] sm:$0xf] %v284
    %v286 = vmul.f32 %v115, 0.003921569
    %v287 = vadd.f32 %v286, 1e-05
    %v288 = vrsqrt.pop %v287
    %v289 = vmul.f32 %v24, %v288
    %v290 = vadd.f32 %v289, %v239
    %292 = vrot.lane.b32.xlu0 %v290, 120
    %v293 = vpop.permute.xlu0 %292
    %v295 = vmul.f32 %v24, %v293
    %v296 = vmul.f32 %v289, %v88
    %v297 = vadd.f32 %v296, %v247
    %299 = vrot.lane.b32.xlu0 %v297, 120
    %v300 = vpop.permute.xlu0 %299
    %v302 = vmul.f32 %v24, %v300
    %304 = vrot.lane.b32.xlu0 %v302, 4
    %v305 = vpop.permute.xlu0 %304
    %v307 = vsub.f32 %v24, %v305
    %v308 = vld [vmem:[#allocation2 + $0x4] sm:$0xf]
    %310 = vset.pattern.permute.xlu0 1
    %311 = vperm.xlu0 %310, %v295
    %v312 = vpop.permute.xlu0 %311
    %v314 = vunpack.c.l.s4 269488144
    %v315 = vunpack.c.0.s8 %v314
    %v316 = vlaneseq
    %v317 = vshrl.u32 %v316, 7
    %v318 = vsub.s32 %v315, %v317
    %v319 = vrot.slane %v312, %v318
    %v321 = vmul.f32 %v308, %v319
    %323 = vset.pattern.permute.xlu0 5
    %324 = vperm.xlu0 %323, %v307
    %v325 = vpop.permute.xlu0 %324
    %v327 = vunpack.c.l.s4 269488144
    %v328 = vunpack.c.0.s8 %v327
    %v329 = vlaneseq
    %v330 = vshrl.u32 %v329, 7
    %v331 = vsub.s32 %v328, %v330
    %v332 = vrot.slane %v325, %v331
    %v334 = vadd.f32 %v321, %v332
    %335 = vst [vmem:[#allocation5 + $0x4] sm:$0xf] %v334
    %v336 = vmul.f32 %v160, 0.003921569
    %v337 = vadd.f32 %v336, 1e-05
    %v338 = vrsqrt.pop %v337
    %v339 = vmul.f32 %v24, %v338
    %v340 = vadd.f32 %v339, %v239
    %342 = vrot.lane.b32.xlu0 %v340, 120
    %v343 = vpop.permute.xlu0 %342
    %v345 = vmul.f32 %v24, %v343
    %v346 = vmul.f32 %v339, %v133
    %v347 = vadd.f32 %v346, %v247
    %349 = vrot.lane.b32.xlu0 %v347, 120
    %v350 = vpop.permute.xlu0 %349
    %v352 = vmul.f32 %v24, %v350
    %354 = vrot.lane.b32.xlu0 %v352, 4
    %v355 = vpop.permute.xlu0 %354
    %v357 = vsub.f32 %v24, %v355
    %v358 = vld [vmem:[#allocation2 + $0x8] sm:$0xf]
    %360 = vset.pattern.permute.xlu0 2
    %361 = vperm.xlu0 %360, %v345
    %v362 = vpop.permute.xlu0 %361
    %v364 = vunpack.c.l.s4 269488144
    %v365 = vunpack.c.0.s8 %v364
    %v366 = vlaneseq
    %v367 = vshrl.u32 %v366, 7
    %v368 = vsub.s32 %v365, %v367
    %v369 = vrot.slane %v362, %v368
    %v371 = vmul.f32 %v358, %v369
    %373 = vset.pattern.permute.xlu0 6
    %374 = vperm.xlu0 %373, %v357
    %v375 = vpop.permute.xlu0 %374
    %v377 = vunpack.c.l.s4 269488144
    %v378 = vunpack.c.0.s8 %v377
    %v379 = vlaneseq
    %v380 = vshrl.u32 %v379, 7
    %v381 = vsub.s32 %v378, %v380
    %v382 = vrot.slane %v375, %v381
    %v384 = vadd.f32 %v371, %v382
    %385 = vst [vmem:[#allocation5 + $0x8] sm:$0xf] %v384
    %v386 = vmul.f32 %v205, 0.003921569
    %v387 = vadd.f32 %v386, 1e-05
    %v388 = vrsqrt.pop %v387
    %v389 = vmul.f32 %v24, %v388
    %v390 = vadd.f32 %v389, %v239
    %392 = vrot.lane.b32.xlu0 %v390, 120
    %v393 = vpop.permute.xlu0 %392
    %v395 = vmul.f32 %v24, %v393
    %v396 = vmul.f32 %v389, %v178
    %v397 = vadd.f32 %v396, %v247
    %399 = vrot.lane.b32.xlu0 %v397, 120
    %v400 = vpop.permute.xlu0 %399
    %v402 = vmul.f32 %v24, %v400
    %404 = vrot.lane.b32.xlu0 %v402, 4
    %v405 = vpop.permute.xlu0 %404
    %v407 = vsub.f32 %v24, %v405
    %v408 = vld [vmem:[#allocation2 + $0xc] sm:$0xf]
    %410 = vset.pattern.permute.xlu0 3
    %411 = vperm.xlu0 %410, %v395
    %v412 = vpop.permute.xlu0 %411
    %v414 = vunpack.c.l.s4 269488144
    %v415 = vunpack.c.0.s8 %v414
    %v416 = vlaneseq
    %v417 = vshrl.u32 %v416, 7
    %v418 = vsub.s32 %v415, %v417
    %v419 = vrot.slane %v412, %v418
    %v421 = vmul.f32 %v408, %v419
    %423 = vset.pattern.permute.xlu0 7
    %424 = vperm.xlu0 %423, %v407
    %v425 = vpop.permute.xlu0 %424
    %v427 = vunpack.c.l.s4 269488144
    %v428 = vunpack.c.0.s8 %v427
    %v429 = vlaneseq
    %v430 = vshrl.u32 %v429, 7
    %v431 = vsub.s32 %v428, %v430
    %v432 = vrot.slane %v425, %v431
    %v434 = vadd.f32 %v421, %v432
    %435 = vst [vmem:[#allocation5 + $0xc] sm:$0xf] %v434
    // Predicated region
    $region14: #{tpu_custom_call.1} parent=1 // pred_check
      _
    $region15: #{tpu_custom_call.1} parent=1 // pred_check_branch
      %437 = sbr.rel (0) target = $region17
    $region16: #{tpu_custom_call.1} parent=1 // pred_region
      %s439 = ssub.s32 256, 256
      %440 = vsyncadd [#allocation4], %s439
      %s442 = sshll.u32 [#allocation5], 4
      %s443 = int_to_ptr.vmem [resolvable:$true] %s442
      %445 = dma.vmem_to_hbm [thread:$0]  %s443, 256, %s2, [#allocation4]
    $region17: #{tpu_custom_call.1} parent=1 // pred_fallthru
      _
    // Predicated region
    $region18: #{tpu_custom_call.1} parent=1 // pred_check
      _
    $region19: #{tpu_custom_call.1} parent=1 // pred_check_branch
      %447 = sbr.rel (0) target = $region21
    $region20: #{tpu_custom_call.1} parent=1 // pred_region
      %448 = dma.done [#allocation4], 256
    $region21: #{tpu_custom_call.1} parent=1 // pred_fallthru
      _
    %449 = vsyncpa [#allocation3], 1
    %450 = vsyncpa [#allocation4], 1

</llo_original>
